<compile_context>
chip_gen: v7x
topology: tpu7x:2x2x1
jax: 0.10.0
libtpu: 0.0.40
codegen_flags: <defaults>
</compile_context>

<pallas_src>
import functools

import jax
import jax.numpy as jnp
from jax.experimental import pallas as pl
from jax.experimental.pallas import tpu as pltpu


def _upsample_kernel(col_ref, x_ref, o_ref, *, stride):
    """Nearest-neighbour upsample of a block of input rows.

    col_ref : (1, W*s) int32 constant, col[0, j] = j // s   (hoisted to wrapper)
    x_ref   : (tr, W)            one row per (n, c, h)
    o_ref   : (tr, s * W * s)    the s replicated output rows per input row,
                                 laid out contiguously (== NCHW output memory).
    """
    s = stride
    tr, w = x_ref.shape
    ws = w * s

    x = x_ref[...]
    col = col_ref[...]                                   # (1, ws)

    # Column replication (W -> W*s): output lane j takes input column j // s.
    # Pure lane-broadcast + select on the VPU; exact for every dtype.
    xc = jnp.broadcast_to(x[:, 0:1], (tr, ws))
    for i in range(1, w):
        xi = jnp.broadcast_to(x[:, i:i + 1], (tr, ws))
        xc = jnp.where(col == i, xi, xc)

    # Row replication (H -> H*s): the s output rows for one input row are
    # identical and contiguous in the collapsed output view -> s sliced stores.
    for k in range(s):
        o_ref[:, k * ws:(k + 1) * ws] = xc


def _pick_block_rows(n_rows, w, s, itemsize, max_out_block_bytes=4 << 20):
    """Rows per block: multiple of the sublane tile (or all rows), output block
    within a ~4 MiB VMEM budget (double-buffered footprint fits v7x's 64 MiB
    scoped VMEM), and >= 2 blocks whenever possible so the parallel grid axis
    can be split across v7x's two TensorCores and pipelined."""
    itemsize = max(1, int(itemsize))
    sub = max(8, 32 // itemsize)                     # 8 (f32/i32), 16 (bf16), 32 (i8)
    lanes = -(-(s * s * w) // 128) * 128             # padded lane width of out block
    row_bytes = lanes * itemsize
    cap = max(sub, int(max_out_block_bytes // row_bytes))
    if n_rows // 8 >= 256:
        cap = min(cap, max(256, n_rows // 8))        # ~8+ big blocks when rows abound
    if n_rows // 2 >= sub:
        cap = min(cap, n_rows // 2)                  # >= 2 blocks (v7x megacore)
    cap = int(min(cap, n_rows))
    if n_rows <= sub or cap < sub:
        return n_rows                                # single full block (tiny input)
    cap -= cap % sub
    for d in range(cap, sub - 1, -sub):              # prefer a divisor -> no ragged block
        if n_rows % d == 0:
            return d
    return cap                                       # ragged last block (masked by Pallas)


def upsample_nearest(x, stride):
    """Pallas equivalent of Upsample_interpolate.forward (mode='nearest')."""
    assert x.ndim == 4
    s = int(stride)
    n, c, h, w = x.shape
    if s == 1:
        return x

    n_rows = n * c * h
    ws = w * s
    wss = s * ws                                     # s output rows per input row

    x2 = x.reshape(n_rows, w)                        # free reshape (contiguous)
    # Hoisted constant: lane -> source-column map (avoids per-step iota/division).
    col = (jnp.arange(ws, dtype=jnp.int32) // s).reshape(1, ws)

    tr = _pick_block_rows(n_rows, w, s, x.dtype.itemsize)
    grid = (pl.cdiv(n_rows, tr),)

    out2 = pl.pallas_call(
        functools.partial(_upsample_kernel, stride=s),
        out_shape=jax.ShapeDtypeStruct((n_rows, wss), x.dtype),
        grid_spec=pltpu.PrefetchScalarGridSpec(
            num_scalar_prefetch=0,
            grid=grid,
            in_specs=[
                pl.BlockSpec((1, ws), lambda i: (0, 0)),   # constant, DMA'd once
                pl.BlockSpec((tr, w), lambda i: (i, 0)),
            ],
            out_specs=pl.BlockSpec((tr, wss), lambda i: (i, 0)),
        ),
        compiler_params=pltpu.CompilerParams(
            dimension_semantics=("parallel",),
            vmem_limit_bytes=32 * 1024 * 1024,
        ),
        cost_estimate=pl.CostEstimate(
            flops=0,
            transcendentals=0,
            bytes_accessed=(1 + s * s) * x.size * x.dtype.itemsize,
        ),
    )(col, x2)

    # Free reshape back: (N*C*H, s*W*s) is contiguous-identical to (N,C,H*s,W*s).
    return out2.reshape(n, c, h * s, w * s)


if __name__ == "__main__":
    key = jax.random.PRNGKey(0)
    N, C, H, W = 2, 4, 16, 16
    stride = 2
    x = jax.random.normal(key, (N, C, H, W), dtype=jnp.float32)

    out = jax.block_until_ready(upsample_nearest(x, stride))

    # Reference: F.interpolate(..., mode='nearest') with integer scale ==
    # element-wise repeat along H and W.
    ref = jnp.repeat(jnp.repeat(x, stride, axis=2), stride, axis=3)

    assert out.shape == (N, C, H * stride, W * stride)
    assert out.dtype == x.dtype
    assert jnp.array_equal(out, ref), float(jnp.max(jnp.abs(out - ref)))

    print("KERNEL_OK")
</pallas_src>

<mosaic_0001>
module attributes {stable_mosaic.version = 11 : i64} {
  func.func @_upsample_kernel(%arg0: i32, %arg1: memref<1x32xi32, #tpu.memory_space<vmem>>, %arg2: memref<64x16xf32, #tpu.memory_space<vmem>>, %arg3: memref<64x64xf32, #tpu.memory_space<vmem>>) attributes {dimension_semantics = [#tpu.dimension_semantics<parallel>], iteration_bounds = array<i64: 2>, scalar_prefetch = 0 : i64, scratch_operands = 0 : i64, tpu.core_type = #tpu.core_type<tc>, window_params = [{pipeline_mode = #tpu.pipeline_mode<synchronous>, transform_indices = @transform_0, window_bounds = array<i64: 1, 32>}, {transform_indices = @transform_1, window_bounds = array<i64: 64, 16>}, {transform_indices = @transform_2, window_bounds = array<i64: 64, 64>}]} {
    %c0 = arith.constant 0 : index
    %c0_0 = arith.constant 0 : index
    %0 = vector.load %arg2[%c0, %c0_0] : memref<64x16xf32, #tpu.memory_space<vmem>>, vector<64x16xf32>
    %c0_1 = arith.constant 0 : index
    %c0_2 = arith.constant 0 : index
    %1 = vector.load %arg1[%c0_1, %c0_2] : memref<1x32xi32, #tpu.memory_space<vmem>>, vector<1x32xi32>
    %2 = vector.extract_strided_slice %0 {offsets = [0, 0], sizes = [64, 1], strides = [1, 1]} : vector<64x16xf32> to vector<64x1xf32>
    %3 = vector.shape_cast %2 : vector<64x1xf32> to vector<64x1xf32>
    %4 = vector.broadcast %3 : vector<64x1xf32> to vector<64x32xf32>
    %5 = vector.extract_strided_slice %0 {offsets = [0, 1], sizes = [64, 1], strides = [1, 1]} : vector<64x16xf32> to vector<64x1xf32>
    %6 = vector.shape_cast %5 : vector<64x1xf32> to vector<64x1xf32>
    %7 = vector.broadcast %6 : vector<64x1xf32> to vector<64x32xf32>
    %c1_i32 = arith.constant 1 : i32
    %8 = vector.broadcast %c1_i32 : i32 to vector<1x32xi32>
    %9 = arith.cmpi eq, %1, %8 : vector<1x32xi32>
    %10 = vector.shape_cast %9 : vector<1x32xi1> to vector<1x32xi1>
    %11 = vector.broadcast %10 : vector<1x32xi1> to vector<64x32xi1>
    %12 = arith.select %11, %7, %4 : vector<64x32xi1>, vector<64x32xf32>
    %13 = vector.extract_strided_slice %0 {offsets = [0, 2], sizes = [64, 1], strides = [1, 1]} : vector<64x16xf32> to vector<64x1xf32>
    %14 = vector.shape_cast %13 : vector<64x1xf32> to vector<64x1xf32>
    %15 = vector.broadcast %14 : vector<64x1xf32> to vector<64x32xf32>
    %c2_i32 = arith.constant 2 : i32
    %16 = vector.broadcast %c2_i32 : i32 to vector<1x32xi32>
    %17 = arith.cmpi eq, %1, %16 : vector<1x32xi32>
    %18 = vector.shape_cast %17 : vector<1x32xi1> to vector<1x32xi1>
    %19 = vector.broadcast %18 : vector<1x32xi1> to vector<64x32xi1>
    %20 = arith.select %19, %15, %12 : vector<64x32xi1>, vector<64x32xf32>
    %21 = vector.extract_strided_slice %0 {offsets = [0, 3], sizes = [64, 1], strides = [1, 1]} : vector<64x16xf32> to vector<64x1xf32>
    %22 = vector.shape_cast %21 : vector<64x1xf32> to vector<64x1xf32>
    %23 = vector.broadcast %22 : vector<64x1xf32> to vector<64x32xf32>
    %c3_i32 = arith.constant 3 : i32
    %24 = vector.broadcast %c3_i32 : i32 to vector<1x32xi32>
    %25 = arith.cmpi eq, %1, %24 : vector<1x32xi32>
    %26 = vector.shape_cast %25 : vector<1x32xi1> to vector<1x32xi1>
    %27 = vector.broadcast %26 : vector<1x32xi1> to vector<64x32xi1>
    %28 = arith.select %27, %23, %20 : vector<64x32xi1>, vector<64x32xf32>
    %29 = vector.extract_strided_slice %0 {offsets = [0, 4], sizes = [64, 1], strides = [1, 1]} : vector<64x16xf32> to vector<64x1xf32>
    %30 = vector.shape_cast %29 : vector<64x1xf32> to vector<64x1xf32>
    %31 = vector.broadcast %30 : vector<64x1xf32> to vector<64x32xf32>
    %c4_i32 = arith.constant 4 : i32
    %32 = vector.broadcast %c4_i32 : i32 to vector<1x32xi32>
    %33 = arith.cmpi eq, %1, %32 : vector<1x32xi32>
    %34 = vector.shape_cast %33 : vector<1x32xi1> to vector<1x32xi1>
    %35 = vector.broadcast %34 : vector<1x32xi1> to vector<64x32xi1>
    %36 = arith.select %35, %31, %28 : vector<64x32xi1>, vector<64x32xf32>
    %37 = vector.extract_strided_slice %0 {offsets = [0, 5], sizes = [64, 1], strides = [1, 1]} : vector<64x16xf32> to vector<64x1xf32>
    %38 = vector.shape_cast %37 : vector<64x1xf32> to vector<64x1xf32>
    %39 = vector.broadcast %38 : vector<64x1xf32> to vector<64x32xf32>
    %c5_i32 = arith.constant 5 : i32
    %40 = vector.broadcast %c5_i32 : i32 to vector<1x32xi32>
    %41 = arith.cmpi eq, %1, %40 : vector<1x32xi32>
    %42 = vector.shape_cast %41 : vector<1x32xi1> to vector<1x32xi1>
    %43 = vector.broadcast %42 : vector<1x32xi1> to vector<64x32xi1>
    %44 = arith.select %43, %39, %36 : vector<64x32xi1>, vector<64x32xf32>
    %45 = vector.extract_strided_slice %0 {offsets = [0, 6], sizes = [64, 1], strides = [1, 1]} : vector<64x16xf32> to vector<64x1xf32>
    %46 = vector.shape_cast %45 : vector<64x1xf32> to vector<64x1xf32>
    %47 = vector.broadcast %46 : vector<64x1xf32> to vector<64x32xf32>
    %c6_i32 = arith.constant 6 : i32
    %48 = vector.broadcast %c6_i32 : i32 to vector<1x32xi32>
    %49 = arith.cmpi eq, %1, %48 : vector<1x32xi32>
    %50 = vector.shape_cast %49 : vector<1x32xi1> to vector<1x32xi1>
    %51 = vector.broadcast %50 : vector<1x32xi1> to vector<64x32xi1>
    %52 = arith.select %51, %47, %44 : vector<64x32xi1>, vector<64x32xf32>
    %53 = vector.extract_strided_slice %0 {offsets = [0, 7], sizes = [64, 1], strides = [1, 1]} : vector<64x16xf32> to vector<64x1xf32>
    %54 = vector.shape_cast %53 : vector<64x1xf32> to vector<64x1xf32>
    %55 = vector.broadcast %54 : vector<64x1xf32> to vector<64x32xf32>
    %c7_i32 = arith.constant 7 : i32
    %56 = vector.broadcast %c7_i32 : i32 to vector<1x32xi32>
    %57 = arith.cmpi eq, %1, %56 : vector<1x32xi32>
    %58 = vector.shape_cast %57 : vector<1x32xi1> to vector<1x32xi1>
    %59 = vector.broadcast %58 : vector<1x32xi1> to vector<64x32xi1>
    %60 = arith.select %59, %55, %52 : vector<64x32xi1>, vector<64x32xf32>
    %61 = vector.extract_strided_slice %0 {offsets = [0, 8], sizes = [64, 1], strides = [1, 1]} : vector<64x16xf32> to vector<64x1xf32>
    %62 = vector.shape_cast %61 : vector<64x1xf32> to vector<64x1xf32>
    %63 = vector.broadcast %62 : vector<64x1xf32> to vector<64x32xf32>
    %c8_i32 = arith.constant 8 : i32
    %64 = vector.broadcast %c8_i32 : i32 to vector<1x32xi32>
    %65 = arith.cmpi eq, %1, %64 : vector<1x32xi32>
    %66 = vector.shape_cast %65 : vector<1x32xi1> to vector<1x32xi1>
    %67 = vector.broadcast %66 : vector<1x32xi1> to vector<64x32xi1>
    %68 = arith.select %67, %63, %60 : vector<64x32xi1>, vector<64x32xf32>
    %69 = vector.extract_strided_slice %0 {offsets = [0, 9], sizes = [64, 1], strides = [1, 1]} : vector<64x16xf32> to vector<64x1xf32>
    %70 = vector.shape_cast %69 : vector<64x1xf32> to vector<64x1xf32>
    %71 = vector.broadcast %70 : vector<64x1xf32> to vector<64x32xf32>
    %c9_i32 = arith.constant 9 : i32
    %72 = vector.broadcast %c9_i32 : i32 to vector<1x32xi32>
    %73 = arith.cmpi eq, %1, %72 : vector<1x32xi32>
    %74 = vector.shape_cast %73 : vector<1x32xi1> to vector<1x32xi1>
    %75 = vector.broadcast %74 : vector<1x32xi1> to vector<64x32xi1>
    %76 = arith.select %75, %71, %68 : vector<64x32xi1>, vector<64x32xf32>
    %77 = vector.extract_strided_slice %0 {offsets = [0, 10], sizes = [64, 1], strides = [1, 1]} : vector<64x16xf32> to vector<64x1xf32>
    %78 = vector.shape_cast %77 : vector<64x1xf32> to vector<64x1xf32>
    %79 = vector.broadcast %78 : vector<64x1xf32> to vector<64x32xf32>
    %c10_i32 = arith.constant 10 : i32
    %80 = vector.broadcast %c10_i32 : i32 to vector<1x32xi32>
    %81 = arith.cmpi eq, %1, %80 : vector<1x32xi32>
    %82 = vector.shape_cast %81 : vector<1x32xi1> to vector<1x32xi1>
    %83 = vector.broadcast %82 : vector<1x32xi1> to vector<64x32xi1>
    %84 = arith.select %83, %79, %76 : vector<64x32xi1>, vector<64x32xf32>
    %85 = vector.extract_strided_slice %0 {offsets = [0, 11], sizes = [64, 1], strides = [1, 1]} : vector<64x16xf32> to vector<64x1xf32>
    %86 = vector.shape_cast %85 : vector<64x1xf32> to vector<64x1xf32>
    %87 = vector.broadcast %86 : vector<64x1xf32> to vector<64x32xf32>
    %c11_i32 = arith.constant 11 : i32
    %88 = vector.broadcast %c11_i32 : i32 to vector<1x32xi32>
    %89 = arith.cmpi eq, %1, %88 : vector<1x32xi32>
    %90 = vector.shape_cast %89 : vector<1x32xi1> to vector<1x32xi1>
    %91 = vector.broadcast %90 : vector<1x32xi1> to vector<64x32xi1>
    %92 = arith.select %91, %87, %84 : vector<64x32xi1>, vector<64x32xf32>
    %93 = vector.extract_strided_slice %0 {offsets = [0, 12], sizes = [64, 1], strides = [1, 1]} : vector<64x16xf32> to vector<64x1xf32>
    %94 = vector.shape_cast %93 : vector<64x1xf32> to vector<64x1xf32>
    %95 = vector.broadcast %94 : vector<64x1xf32> to vector<64x32xf32>
    %c12_i32 = arith.constant 12 : i32
    %96 = vector.broadcast %c12_i32 : i32 to vector<1x32xi32>
    %97 = arith.cmpi eq, %1, %96 : vector<1x32xi32>
    %98 = vector.shape_cast %97 : vector<1x32xi1> to vector<1x32xi1>
    %99 = vector.broadcast %98 : vector<1x32xi1> to vector<64x32xi1>
    %100 = arith.select %99, %95, %92 : vector<64x32xi1>, vector<64x32xf32>
    %101 = vector.extract_strided_slice %0 {offsets = [0, 13], sizes = [64, 1], strides = [1, 1]} : vector<64x16xf32> to vector<64x1xf32>
    %102 = vector.shape_cast %101 : vector<64x1xf32> to vector<64x1xf32>
    %103 = vector.broadcast %102 : vector<64x1xf32> to vector<64x32xf32>
    %c13_i32 = arith.constant 13 : i32
    %104 = vector.broadcast %c13_i32 : i32 to vector<1x32xi32>
    %105 = arith.cmpi eq, %1, %104 : vector<1x32xi32>
    %106 = vector.shape_cast %105 : vector<1x32xi1> to vector<1x32xi1>
    %107 = vector.broadcast %106 : vector<1x32xi1> to vector<64x32xi1>
    %108 = arith.select %107, %103, %100 : vector<64x32xi1>, vector<64x32xf32>
    %109 = vector.extract_strided_slice %0 {offsets = [0, 14], sizes = [64, 1], strides = [1, 1]} : vector<64x16xf32> to vector<64x1xf32>
    %110 = vector.shape_cast %109 : vector<64x1xf32> to vector<64x1xf32>
    %111 = vector.broadcast %110 : vector<64x1xf32> to vector<64x32xf32>
    %c14_i32 = arith.constant 14 : i32
    %112 = vector.broadcast %c14_i32 : i32 to vector<1x32xi32>
    %113 = arith.cmpi eq, %1, %112 : vector<1x32xi32>
    %114 = vector.shape_cast %113 : vector<1x32xi1> to vector<1x32xi1>
    %115 = vector.broadcast %114 : vector<1x32xi1> to vector<64x32xi1>
    %116 = arith.select %115, %111, %108 : vector<64x32xi1>, vector<64x32xf32>
    %117 = vector.extract_strided_slice %0 {offsets = [0, 15], sizes = [64, 1], strides = [1, 1]} : vector<64x16xf32> to vector<64x1xf32>
    %118 = vector.shape_cast %117 : vector<64x1xf32> to vector<64x1xf32>
    %119 = vector.broadcast %118 : vector<64x1xf32> to vector<64x32xf32>
    %c15_i32 = arith.constant 15 : i32
    %120 = vector.broadcast %c15_i32 : i32 to vector<1x32xi32>
    %121 = arith.cmpi eq, %1, %120 : vector<1x32xi32>
    %122 = vector.shape_cast %121 : vector<1x32xi1> to vector<1x32xi1>
    %123 = vector.broadcast %122 : vector<1x32xi1> to vector<64x32xi1>
    %124 = arith.select %123, %119, %116 : vector<64x32xi1>, vector<64x32xf32>
    %c0_3 = arith.constant 0 : index
    %c0_4 = arith.constant 0 : index
    %125 = vector.load %arg3[%c0_3, %c0_4] : memref<64x64xf32, #tpu.memory_space<vmem>>, vector<64x32xf32>
    tpu.vector_store %arg3[%c0_3, %c0_4], %124 {strides = array<i32>} : memref<64x64xf32, #tpu.memory_space<vmem>>, vector<64x32xf32>,
    %c0_5 = arith.constant 0 : index
    %c32 = arith.constant 32 : index
    %126 = vector.load %arg3[%c0_5, %c32] : memref<64x64xf32, #tpu.memory_space<vmem>>, vector<64x32xf32>
    tpu.vector_store %arg3[%c0_5, %c32], %124 {strides = array<i32>} : memref<64x64xf32, #tpu.memory_space<vmem>>, vector<64x32xf32>,
    return
  }
  func.func @transform_0(%arg0: i32) -> (i32, i32) {
    %c0_i32 = arith.constant 0 : i32
    %c0_i32_0 = arith.constant 0 : i32
    %c0_i32_1 = arith.constant 0 : i32
    return %c0_i32, %c0_i32_0 : i32, i32
  }
  func.func @transform_1(%arg0: i32) -> (i32, i32) {
    %c0_i32 = arith.constant 0 : i32
    %c0_i32_0 = arith.constant 0 : i32
    return %arg0, %c0_i32 : i32, i32
  }
  func.func @transform_2(%arg0: i32) -> (i32, i32) {
    %c0_i32 = arith.constant 0 : i32
    %c0_i32_0 = arith.constant 0 : i32
    return %arg0, %c0_i32 : i32, i32
  }
}

</mosaic_0001>

<llo_original>
// kernel: tpu_custom_call.1
$region0: #{tpu_custom_call.1}
  #allocation0 [shape = 'u32[]', space=smem, size = 0x4, offset = 0x4, fixed_abs, tag = 'smem constant byte address 0x4 - core index']
  #allocation1 [shape = 'u32[144,128]{1,0:T(1,128)}', space=vmem, size = 0x12000, scoped, tag = 'internal scratch']
  %s0 = inlined_call_operand.vmem [shape: s32[1,32], index: 0, kind: input, shape index: {}]
  %s1 = inlined_call_operand.vmem [shape: f32[128,16], index: 1, kind: input, shape index: {}]
  %s2 = inlined_call_operand.vmem [shape: f32[128,64], index: 2, kind: output, shape index: {}]
  %s3 = sld [smem:[#allocation0]]
  $region41: #{tpu_custom_call.1} parent=0
    _
  %s5 = ssub.s32 1, %s3
  %s6 = scalar_select 0, %s5, %s3
  loop: start=0, step=1, limit=4
  $region2: #{tpu_custom_call.1} parent=0 // loop_pre_header
    _
  $region3: #{tpu_custom_call.1} parent=0 // loop_header
    %s8 = sphi 0, %s12
    %p9 = scmp.ge.s32.totalorder %s8, 4
    %s16 = sphi 0, %s16
    %s18 = sphi 0, %s16
    %s19 = sphi 0, %s18
    %s33 = sphi 0, %s19
    %s39 = sphi 0, %s41
    %s42 = sphi 0, %s39
    %s43 = sphi 0, %s42
    %s59 = sphi 0, %s43
    %s65 = sphi 0, %s67
    %s68 = sphi 0, %s65
    %s69 = sphi 0, %s68
    %s85 = sphi 0, %s69
  $region4: #{tpu_custom_call.1} parent=0 // loop_header_branch
    %11 = sbr.rel (%p9) target = $region8
  $region5: #{tpu_custom_call.1} parent=0 // loop_body
    %s13 = ssub.s32 %s8, 1
    %s14 = ssub.s32 %s8, 2
    %s15 = sadd.s32 %s8, 1
    %s17 = sadd.s32 %s16, 1
    %p20 = scmp.eq.s32.totalorder %s8, 1
    %p21 = scmp.ne.s32.totalorder %s16, %s18
    %p22 = scmp.eq.s32.totalorder %s8, 0
    %p23 = por %p21, %p22
    %p24 = scmp.ne.s32.totalorder %s16, %s18
    %p25 = scmp.eq.s32.totalorder %s13, 1
    %p26 = por %p24, %p25
    %p27 = scmp.ne.s32.totalorder %s18, %s19
    %p28 = scmp.eq.s32.totalorder %s13, 0
    %p29 = por %p27, %p28
    %p30 = scmp.ne.s32.totalorder %s18, %s19
    %p31 = scmp.eq.s32.totalorder %s14, 1
    %p32 = por %p30, %p31
    %p34 = scmp.ne.s32.totalorder %s19, %s33
    %p35 = scmp.eq.s32.totalorder %s14, 0
    %p36 = por %p34, %p35
    %s37 = ssub.s32 %s8, %s15
    %p38 = scmp.eq.s32.totalorder %s37, 0
    %s40 = sadd.s32 %s39, 1
    %s41 = scalar_select %p38, %s39, %s40
    %p44 = pneg %p38
    %p45 = scmp.eq.s32.totalorder %s8, 1
    %p46 = por %p44, %p45
    %p47 = scmp.ne.s32.totalorder %s39, %s42
    %p48 = scmp.eq.s32.totalorder %s8, 0
    %p49 = por %p47, %p48
    %p50 = scmp.ne.s32.totalorder %s39, %s42
    %p51 = scmp.eq.s32.totalorder %s13, 1
    %p52 = por %p50, %p51
    %p53 = scmp.ne.s32.totalorder %s42, %s43
    %p54 = scmp.eq.s32.totalorder %s13, 0
    %p55 = por %p53, %p54
    %p56 = scmp.ne.s32.totalorder %s42, %s43
    %p57 = scmp.eq.s32.totalorder %s14, 1
    %p58 = por %p56, %p57
    %p60 = scmp.ne.s32.totalorder %s43, %s59
    %p61 = scmp.eq.s32.totalorder %s14, 0
    %p62 = por %p60, %p61
    %s63 = ssub.s32 %s8, %s15
    %p64 = scmp.eq.s32.totalorder %s63, 0
    %s66 = sadd.s32 %s65, 1
    %s67 = scalar_select %p64, %s65, %s66
    %p70 = pneg %p64
    %p71 = scmp.eq.s32.totalorder %s8, 1
    %p72 = por %p70, %p71
    %p73 = scmp.ne.s32.totalorder %s65, %s68
    %p74 = scmp.eq.s32.totalorder %s8, 0
    %p75 = por %p73, %p74
    %p76 = scmp.ne.s32.totalorder %s65, %s68
    %p77 = scmp.eq.s32.totalorder %s13, 1
    %p78 = por %p76, %p77
    %p79 = scmp.ne.s32.totalorder %s68, %s69
    %p80 = scmp.eq.s32.totalorder %s13, 0
    %p81 = por %p79, %p80
    %p82 = scmp.ne.s32.totalorder %s68, %s69
    %p83 = scmp.eq.s32.totalorder %s14, 1
    %p84 = por %p82, %p83
    %p86 = scmp.ne.s32.totalorder %s69, %s85
    %p87 = scmp.eq.s32.totalorder %s14, 0
    %p88 = por %p86, %p87
    %p89 = scmp.le.s32.totalorder 1, %s8
    %p90 = scmp.lt.s32.totalorder %s8, 3
    %p91 = pnand %p89, %p90
    %p92 = pneg %p91
    // Predicated region
    $region9: #{tpu_custom_call.1} parent=5 // pred_check
      _
    $region10: #{tpu_custom_call.1} parent=5 // pred_check_branch
      %94 = sbr.rel (%p91) target = $region12
    $region11: #{tpu_custom_call.1} parent=5 // pred_region
      %s95 = ssub.s32 %s8, 1
      // Predicated region
      $region13: #{tpu_custom_call.1} parent=11 // pred_check
        %p96 = pneg %p29
      $region14: #{tpu_custom_call.1} parent=11 // pred_check_branch
        %98 = sbr.rel (%p96) target = $region16
      $region15: #{tpu_custom_call.1} parent=11 // pred_region
        _
      $region16: #{tpu_custom_call.1} parent=11 // pred_fallthru
        _
    $region12: #{tpu_custom_call.1} parent=5 // pred_fallthru
      _
    %p99 = scmp.lt.s32.totalorder %s8, 2
    // Predicated region
    $region17: #{tpu_custom_call.1} parent=5 // pred_check
      %p100 = pneg %p99
    $region18: #{tpu_custom_call.1} parent=5 // pred_check_branch
      %102 = sbr.rel (%p100) target = $region20
    $region19: #{tpu_custom_call.1} parent=5 // pred_region
      // Predicated region
      $region21: #{tpu_custom_call.1} parent=19 // pred_check
        %p103 = pneg %p49
      $region22: #{tpu_custom_call.1} parent=19 // pred_check_branch
        %105 = sbr.rel (%p103) target = $region24
      $region23: #{tpu_custom_call.1} parent=19 // pred_region
        %s106 = smul.u32 8, %s8
        %p107 = scmp.lt.s32.totalorder %s106, 15
        %s108 = scalar_select %p107, %s106, 15
        %s109 = smul.addr %s108, 8
        %s110 = scalar_lea.vmem %s1, %s109
        %s111 = smul.u32 8, %s8
      $region24: #{tpu_custom_call.1} parent=19 // pred_fallthru
        _
    $region20: #{tpu_custom_call.1} parent=5 // pred_fallthru
      _
    %p112 = scmp.le.s32.totalorder 1, %s8
    %p113 = scmp.lt.s32.totalorder %s8, 3
    %p114 = pnand %p112, %p113
    %p115 = pneg %p114
    // Predicated region
    $region25: #{tpu_custom_call.1} parent=5 // pred_check
      _
    $region26: #{tpu_custom_call.1} parent=5 // pred_check_branch
      %117 = sbr.rel (%p114) target = $region28
    $region27: #{tpu_custom_call.1} parent=5 // pred_region
      %s118 = ssub.s32 %s8, 1
      %p119 = pneg %p29
      %p120 = pneg %p26
      %s121 = smul.u32 8, %s13
      %p122 = scmp.lt.s32.totalorder %s121, 15
      %s123 = scalar_select %p122, %s121, 15
      %s124 = smul.addr %s123, 8
      %s125 = scalar_lea.vmem %s1, %s124
      %p126 = pneg %p55
      %p127 = pneg %p52
      %p128 = pneg %p81
      %p129 = pneg %p78
      %s130 = smul.u32 8, %s13
      %p131 = scmp.lt.s32.totalorder %s130, 15
      %s132 = scalar_select %p131, %s130, 15
      %s133 = smul.addr %s132, 8
      %s134 = scalar_lea.vmem %s2, %s133
      %s135 = smul.u32 8, %s13
      %p136 = scmp.lt.s32.totalorder %s135, 15
      %s137 = scalar_select %p136, %s135, 15
      %s138 = smul.addr %s137, 8
      %s139 = scalar_lea.vmem %s1, %s138
      %s140 = smul.u32 8, %s13
      %s141 = smul.u32 8, %s13
      %p142 = scmp.lt.s32.totalorder %s141, 15
      %s143 = scalar_select %p142, %s141, 15
      %s144 = smul.addr %s143, 8
      %s145 = scalar_lea.vmem %s2, %s144
      %s146 = smul.u32 8, %s13
      %v147 = vld [vmem:[%s139] sm:$0xff]
      %v148 = vld [vmem:[%s139 + $0x8] sm:$0xff]
      %v149 = vld [vmem:[%s139 + $0x10] sm:$0xff]
      %v150 = vld [vmem:[%s139 + $0x18] sm:$0xff]
      %v151 = vld [vmem:[%s139 + $0x20] sm:$0xff]
      %v152 = vld [vmem:[%s139 + $0x28] sm:$0xff]
      %v153 = vld [vmem:[%s139 + $0x30] sm:$0xff]
      %v154 = vld [vmem:[%s139 + $0x38] sm:$0xff]
      %v155 = vld [vmem:[%s0] sm:$0x1]
      %157 = vset.pattern.permute.xlu0 0
      %158 = vperm.xlu0 %157, %v147
      %v159 = vpop.permute.xlu0 %158
      %162 = vset.pattern.permute.xlu0 0
      %163 = vperm.xlu0 %162, %v148
      %v164 = vpop.permute.xlu0 %163
      %167 = vset.pattern.permute.xlu0 0
      %168 = vperm.xlu0 %167, %v149
      %v169 = vpop.permute.xlu0 %168
      %172 = vset.pattern.permute.xlu0 0
      %173 = vperm.xlu0 %172, %v150
      %v174 = vpop.permute.xlu0 %173
      %177 = vset.pattern.permute.xlu0 0
      %178 = vperm.xlu0 %177, %v151
      %v179 = vpop.permute.xlu0 %178
      %182 = vset.pattern.permute.xlu0 0
      %183 = vperm.xlu0 %182, %v152
      %v184 = vpop.permute.xlu0 %183
      %187 = vset.pattern.permute.xlu0 0
      %188 = vperm.xlu0 %187, %v153
      %v189 = vpop.permute.xlu0 %188
      %192 = vset.pattern.permute.xlu0 0
      %193 = vperm.xlu0 %192, %v154
      %v194 = vpop.permute.xlu0 %193
      %196 = vset.pattern.permute.xlu0 1
      %197 = vperm.xlu0 %196, %v147
      %v198 = vpop.permute.xlu0 %197
      %200 = vset.pattern.permute.xlu0 1
      %201 = vperm.xlu0 %200, %v148
      %v202 = vpop.permute.xlu0 %201
      %204 = vset.pattern.permute.xlu0 1
      %205 = vperm.xlu0 %204, %v149
      %v206 = vpop.permute.xlu0 %205
      %208 = vset.pattern.permute.xlu0 1
      %209 = vperm.xlu0 %208, %v150
      %v210 = vpop.permute.xlu0 %209
      %212 = vset.pattern.permute.xlu0 1
      %213 = vperm.xlu0 %212, %v151
      %v214 = vpop.permute.xlu0 %213
      %216 = vset.pattern.permute.xlu0 1
      %217 = vperm.xlu0 %216, %v152
      %v218 = vpop.permute.xlu0 %217
      %220 = vset.pattern.permute.xlu0 1
      %221 = vperm.xlu0 %220, %v153
      %v222 = vpop.permute.xlu0 %221
      %224 = vset.pattern.permute.xlu0 1
      %225 = vperm.xlu0 %224, %v154
      %v226 = vpop.permute.xlu0 %225
      %vm228 = vcmp.eq.s32.totalorder %v155, 1
      %v229 = vsel %vm228, 1, 0
      %v230 = vlaneseq
      %v231 = vshrl.u32 %v230, 7
      %v232 = vsub.s32 0, %v231
      %v233 = vrot.slane %v229, %v232
      %vm234 = vcmp.eq.s32.totalorder %v233, 1
      %v235 = vsel %vm234, %v198, %v159
      %v236 = vsel %vm234, %v202, %v164
      %v237 = vsel %vm234, %v206, %v169
      %v238 = vsel %vm234, %v210, %v174
      %v239 = vsel %vm234, %v214, %v179
      %v240 = vsel %vm234, %v218, %v184
      %v241 = vsel %vm234, %v222, %v189
      %v242 = vsel %vm234, %v226, %v194
      %243 = vset.pattern.permute.xlu0 2
      %244 = vperm.xlu0 %243, %v147
      %v245 = vpop.permute.xlu0 %244
      %247 = vset.pattern.permute.xlu0 2
      %248 = vperm.xlu0 %247, %v148
      %v249 = vpop.permute.xlu0 %248
      %251 = vset.pattern.permute.xlu0 2
      %252 = vperm.xlu0 %251, %v149
      %v253 = vpop.permute.xlu0 %252
      %255 = vset.pattern.permute.xlu0 2
      %256 = vperm.xlu0 %255, %v150
      %v257 = vpop.permute.xlu0 %256
      %259 = vset.pattern.permute.xlu0 2
      %260 = vperm.xlu0 %259, %v151
      %v261 = vpop.permute.xlu0 %260
      %263 = vset.pattern.permute.xlu0 2
      %264 = vperm.xlu0 %263, %v152
      %v265 = vpop.permute.xlu0 %264
      %267 = vset.pattern.permute.xlu0 2
      %268 = vperm.xlu0 %267, %v153
      %v269 = vpop.permute.xlu0 %268
      %271 = vset.pattern.permute.xlu0 2
      %272 = vperm.xlu0 %271, %v154
      %v273 = vpop.permute.xlu0 %272
      %vm275 = vcmp.eq.s32.totalorder %v155, 2
      %v276 = vsel %vm275, 1, 0
      %v277 = vlaneseq
      %v278 = vshrl.u32 %v277, 7
      %v279 = vsub.s32 0, %v278
      %v280 = vrot.slane %v276, %v279
      %vm281 = vcmp.eq.s32.totalorder %v280, 1
      %v282 = vsel %vm281, %v245, %v235
      %v283 = vsel %vm281, %v249, %v236
      %v284 = vsel %vm281, %v253, %v237
      %v285 = vsel %vm281, %v257, %v238
      %v286 = vsel %vm281, %v261, %v239
      %v287 = vsel %vm281, %v265, %v240
      %v288 = vsel %vm281, %v269, %v241
      %v289 = vsel %vm281, %v273, %v242
      %290 = vset.pattern.permute.xlu0 3
      %291 = vperm.xlu0 %290, %v147
      %v292 = vpop.permute.xlu0 %291
      %294 = vset.pattern.permute.xlu0 3
      %295 = vperm.xlu0 %294, %v148
      %v296 = vpop.permute.xlu0 %295
      %298 = vset.pattern.permute.xlu0 3
      %299 = vperm.xlu0 %298, %v149
      %v300 = vpop.permute.xlu0 %299
      %302 = vset.pattern.permute.xlu0 3
      %303 = vperm.xlu0 %302, %v150
      %v304 = vpop.permute.xlu0 %303
      %306 = vset.pattern.permute.xlu0 3
      %307 = vperm.xlu0 %306, %v151
      %v308 = vpop.permute.xlu0 %307
      %310 = vset.pattern.permute.xlu0 3
      %311 = vperm.xlu0 %310, %v152
      %v312 = vpop.permute.xlu0 %311
      %314 = vset.pattern.permute.xlu0 3
      %315 = vperm.xlu0 %314, %v153
      %v316 = vpop.permute.xlu0 %315
      %318 = vset.pattern.permute.xlu0 3
      %319 = vperm.xlu0 %318, %v154
      %v320 = vpop.permute.xlu0 %319
      %vm322 = vcmp.eq.s32.totalorder %v155, 3
      %v323 = vsel %vm322, 1, 0
      %v324 = vlaneseq
      %v325 = vshrl.u32 %v324, 7
      %v326 = vsub.s32 0, %v325
      %v327 = vrot.slane %v323, %v326
      %vm328 = vcmp.eq.s32.totalorder %v327, 1
      %v329 = vsel %vm328, %v292, %v282
      %v330 = vsel %vm328, %v296, %v283
      %v331 = vsel %vm328, %v300, %v284
      %v332 = vsel %vm328, %v304, %v285
      %v333 = vsel %vm328, %v308, %v286
      %v334 = vsel %vm328, %v312, %v287
      %v335 = vsel %vm328, %v316, %v288
      %v336 = vsel %vm328, %v320, %v289
      %337 = vset.pattern.permute.xlu0 4
      %338 = vperm.xlu0 %337, %v147
      %v339 = vpop.permute.xlu0 %338
      %341 = vset.pattern.permute.xlu0 4
      %342 = vperm.xlu0 %341, %v148
      %v343 = vpop.permute.xlu0 %342
      %345 = vset.pattern.permute.xlu0 4
      %346 = vperm.xlu0 %345, %v149
      %v347 = vpop.permute.xlu0 %346
      %349 = vset.pattern.permute.xlu0 4
      %350 = vperm.xlu0 %349, %v150
      %v351 = vpop.permute.xlu0 %350
      %353 = vset.pattern.permute.xlu0 4
      %354 = vperm.xlu0 %353, %v151
      %v355 = vpop.permute.xlu0 %354
      %357 = vset.pattern.permute.xlu0 4
      %358 = vperm.xlu0 %357, %v152
      %v359 = vpop.permute.xlu0 %358
      %361 = vset.pattern.permute.xlu0 4
      %362 = vperm.xlu0 %361, %v153
      %v363 = vpop.permute.xlu0 %362
      %365 = vset.pattern.permute.xlu0 4
      %366 = vperm.xlu0 %365, %v154
      %v367 = vpop.permute.xlu0 %366
      %vm369 = vcmp.eq.s32.totalorder %v155, 4
      %v370 = vsel %vm369, 1, 0
      %v371 = vlaneseq
      %v372 = vshrl.u32 %v371, 7
      %v373 = vsub.s32 0, %v372
      %v374 = vrot.slane %v370, %v373
      %vm375 = vcmp.eq.s32.totalorder %v374, 1
      %v376 = vsel %vm375, %v339, %v329
      %v377 = vsel %vm375, %v343, %v330
      %v378 = vsel %vm375, %v347, %v331
      %v379 = vsel %vm375, %v351, %v332
      %v380 = vsel %vm375, %v355, %v333
      %v381 = vsel %vm375, %v359, %v334
      %v382 = vsel %vm375, %v363, %v335
      %v383 = vsel %vm375, %v367, %v336
      %384 = vset.pattern.permute.xlu0 5
      %385 = vperm.xlu0 %384, %v147
      %v386 = vpop.permute.xlu0 %385
      %388 = vset.pattern.permute.xlu0 5
      %389 = vperm.xlu0 %388, %v148
      %v390 = vpop.permute.xlu0 %389
      %392 = vset.pattern.permute.xlu0 5
      %393 = vperm.xlu0 %392, %v149
      %v394 = vpop.permute.xlu0 %393
      %396 = vset.pattern.permute.xlu0 5
      %397 = vperm.xlu0 %396, %v150
      %v398 = vpop.permute.xlu0 %397
      %400 = vset.pattern.permute.xlu0 5
      %401 = vperm.xlu0 %400, %v151
      %v402 = vpop.permute.xlu0 %401
      %404 = vset.pattern.permute.xlu0 5
      %405 = vperm.xlu0 %404, %v152
      %v406 = vpop.permute.xlu0 %405
      %408 = vset.pattern.permute.xlu0 5
      %409 = vperm.xlu0 %408, %v153
      %v410 = vpop.permute.xlu0 %409
      %412 = vset.pattern.permute.xlu0 5
      %413 = vperm.xlu0 %412, %v154
      %v414 = vpop.permute.xlu0 %413
      %vm416 = vcmp.eq.s32.totalorder %v155, 5
      %v417 = vsel %vm416, 1, 0
      %v418 = vlaneseq
      %v419 = vshrl.u32 %v418, 7
      %v420 = vsub.s32 0, %v419
      %v421 = vrot.slane %v417, %v420
      %vm422 = vcmp.eq.s32.totalorder %v421, 1
      %v423 = vsel %vm422, %v386, %v376
      %v424 = vsel %vm422, %v390, %v377
      %v425 = vsel %vm422, %v394, %v378
      %v426 = vsel %vm422, %v398, %v379
      %v427 = vsel %vm422, %v402, %v380
      %v428 = vsel %vm422, %v406, %v381
      %v429 = vsel %vm422, %v410, %v382
      %v430 = vsel %vm422, %v414, %v383
      %431 = vset.pattern.permute.xlu0 6
      %432 = vperm.xlu0 %431, %v147
      %v433 = vpop.permute.xlu0 %432
      %435 = vset.pattern.permute.xlu0 6
      %436 = vperm.xlu0 %435, %v148
      %v437 = vpop.permute.xlu0 %436
      %439 = vset.pattern.permute.xlu0 6
      %440 = vperm.xlu0 %439, %v149
      %v441 = vpop.permute.xlu0 %440
      %443 = vset.pattern.permute.xlu0 6
      %444 = vperm.xlu0 %443, %v150
      %v445 = vpop.permute.xlu0 %444
      %447 = vset.pattern.permute.xlu0 6
      %448 = vperm.xlu0 %447, %v151
      %v449 = vpop.permute.xlu0 %448
      %451 = vset.pattern.permute.xlu0 6
      %452 = vperm.xlu0 %451, %v152
      %v453 = vpop.permute.xlu0 %452
      %455 = vset.pattern.permute.xlu0 6
      %456 = vperm.xlu0 %455, %v153
      %v457 = vpop.permute.xlu0 %456
      %459 = vset.pattern.permute.xlu0 6
      %460 = vperm.xlu0 %459, %v154
      %v461 = vpop.permute.xlu0 %460
      %vm463 = vcmp.eq.s32.totalorder %v155, 6
      %v464 = vsel %vm463, 1, 0
      %v465 = vlaneseq
      %v466 = vshrl.u32 %v465, 7
      %v467 = vsub.s32 0, %v466
      %v468 = vrot.slane %v464, %v467
      %vm469 = vcmp.eq.s32.totalorder %v468, 1
      %v470 = vsel %vm469, %v433, %v423
      %v471 = vsel %vm469, %v437, %v424
      %v472 = vsel %vm469, %v441, %v425
      %v473 = vsel %vm469, %v445, %v426
      %v474 = vsel %vm469, %v449, %v427
      %v475 = vsel %vm469, %v453, %v428
      %v476 = vsel %vm469, %v457, %v429
      %v477 = vsel %vm469, %v461, %v430
      %478 = vset.pattern.permute.xlu0 7
      %479 = vperm.xlu0 %478, %v147
      %v480 = vpop.permute.xlu0 %479
      %482 = vset.pattern.permute.xlu0 7
      %483 = vperm.xlu0 %482, %v148
      %v484 = vpop.permute.xlu0 %483
      %486 = vset.pattern.permute.xlu0 7
      %487 = vperm.xlu0 %486, %v149
      %v488 = vpop.permute.xlu0 %487
      %490 = vset.pattern.permute.xlu0 7
      %491 = vperm.xlu0 %490, %v150
      %v492 = vpop.permute.xlu0 %491
      %494 = vset.pattern.permute.xlu0 7
      %495 = vperm.xlu0 %494, %v151
      %v496 = vpop.permute.xlu0 %495
      %498 = vset.pattern.permute.xlu0 7
      %499 = vperm.xlu0 %498, %v152
      %v500 = vpop.permute.xlu0 %499
      %502 = vset.pattern.permute.xlu0 7
      %503 = vperm.xlu0 %502, %v153
      %v504 = vpop.permute.xlu0 %503
      %506 = vset.pattern.permute.xlu0 7
      %507 = vperm.xlu0 %506, %v154
      %v508 = vpop.permute.xlu0 %507
      %vm510 = vcmp.eq.s32.totalorder %v155, 7
      %v511 = vsel %vm510, 1, 0
      %v512 = vlaneseq
      %v513 = vshrl.u32 %v512, 7
      %v514 = vsub.s32 0, %v513
      %v515 = vrot.slane %v511, %v514
      %vm516 = vcmp.eq.s32.totalorder %v515, 1
      %v517 = vsel %vm516, %v480, %v470
      %v518 = vsel %vm516, %v484, %v471
      %v519 = vsel %vm516, %v488, %v472
      %v520 = vsel %vm516, %v492, %v473
      %v521 = vsel %vm516, %v496, %v474
      %v522 = vsel %vm516, %v500, %v475
      %v523 = vsel %vm516, %v504, %v476
      %v524 = vsel %vm516, %v508, %v477
      %525 = vset.pattern.permute.xlu0 8
      %526 = vperm.xlu0 %525, %v147
      %v527 = vpop.permute.xlu0 %526
      %529 = vset.pattern.permute.xlu0 8
      %530 = vperm.xlu0 %529, %v148
      %v531 = vpop.permute.xlu0 %530
      %533 = vset.pattern.permute.xlu0 8
      %534 = vperm.xlu0 %533, %v149
      %v535 = vpop.permute.xlu0 %534
      %537 = vset.pattern.permute.xlu0 8
      %538 = vperm.xlu0 %537, %v150
      %v539 = vpop.permute.xlu0 %538
      %541 = vset.pattern.permute.xlu0 8
      %542 = vperm.xlu0 %541, %v151
      %v543 = vpop.permute.xlu0 %542
      %545 = vset.pattern.permute.xlu0 8
      %546 = vperm.xlu0 %545, %v152
      %v547 = vpop.permute.xlu0 %546
      %549 = vset.pattern.permute.xlu0 8
      %550 = vperm.xlu0 %549, %v153
      %v551 = vpop.permute.xlu0 %550
      %553 = vset.pattern.permute.xlu0 8
      %554 = vperm.xlu0 %553, %v154
      %v555 = vpop.permute.xlu0 %554
      %vm557 = vcmp.eq.s32.totalorder %v155, 8
      %v558 = vsel %vm557, 1, 0
      %v559 = vlaneseq
      %v560 = vshrl.u32 %v559, 7
      %v561 = vsub.s32 0, %v560
      %v562 = vrot.slane %v558, %v561
      %vm563 = vcmp.eq.s32.totalorder %v562, 1
      %v564 = vsel %vm563, %v527, %v517
      %v565 = vsel %vm563, %v531, %v518
      %v566 = vsel %vm563, %v535, %v519
      %v567 = vsel %vm563, %v539, %v520
      %v568 = vsel %vm563, %v543, %v521
      %v569 = vsel %vm563, %v547, %v522
      %v570 = vsel %vm563, %v551, %v523
      %v571 = vsel %vm563, %v555, %v524
      %572 = vset.pattern.permute.xlu0 9
      %573 = vperm.xlu0 %572, %v147
      %v574 = vpop.permute.xlu0 %573
      %576 = vset.pattern.permute.xlu0 9
      %577 = vperm.xlu0 %576, %v148
      %v578 = vpop.permute.xlu0 %577
      %580 = vset.pattern.permute.xlu0 9
      %581 = vperm.xlu0 %580, %v149
      %v582 = vpop.permute.xlu0 %581
      %584 = vset.pattern.permute.xlu0 9
      %585 = vperm.xlu0 %584, %v150
      %v586 = vpop.permute.xlu0 %585
      %588 = vset.pattern.permute.xlu0 9
      %589 = vperm.xlu0 %588, %v151
      %v590 = vpop.permute.xlu0 %589
      %592 = vset.pattern.permute.xlu0 9
      %593 = vperm.xlu0 %592, %v152
      %v594 = vpop.permute.xlu0 %593
      %596 = vset.pattern.permute.xlu0 9
      %597 = vperm.xlu0 %596, %v153
      %v598 = vpop.permute.xlu0 %597
      %600 = vset.pattern.permute.xlu0 9
      %601 = vperm.xlu0 %600, %v154
      %v602 = vpop.permute.xlu0 %601
      %vm604 = vcmp.eq.s32.totalorder %v155, 9
      %v605 = vsel %vm604, 1, 0
      %v606 = vlaneseq
      %v607 = vshrl.u32 %v606, 7
      %v608 = vsub.s32 0, %v607
      %v609 = vrot.slane %v605, %v608
      %vm610 = vcmp.eq.s32.totalorder %v609, 1
      %v611 = vsel %vm610, %v574, %v564
      %v612 = vsel %vm610, %v578, %v565
      %v613 = vsel %vm610, %v582, %v566
      %v614 = vsel %vm610, %v586, %v567
      %v615 = vsel %vm610, %v590, %v568
      %v616 = vsel %vm610, %v594, %v569
      %v617 = vsel %vm610, %v598, %v570
      %v618 = vsel %vm610, %v602, %v571
      %619 = vset.pattern.permute.xlu0 10
      %620 = vperm.xlu0 %619, %v147
      %v621 = vpop.permute.xlu0 %620
      %623 = vset.pattern.permute.xlu0 10
      %624 = vperm.xlu0 %623, %v148
      %v625 = vpop.permute.xlu0 %624
      %627 = vset.pattern.permute.xlu0 10
      %628 = vperm.xlu0 %627, %v149
      %v629 = vpop.permute.xlu0 %628
      %631 = vset.pattern.permute.xlu0 10
      %632 = vperm.xlu0 %631, %v150
      %v633 = vpop.permute.xlu0 %632
      %635 = vset.pattern.permute.xlu0 10
      %636 = vperm.xlu0 %635, %v151
      %v637 = vpop.permute.xlu0 %636
      %639 = vset.pattern.permute.xlu0 10
      %640 = vperm.xlu0 %639, %v152
      %v641 = vpop.permute.xlu0 %640
      %643 = vset.pattern.permute.xlu0 10
      %644 = vperm.xlu0 %643, %v153
      %v645 = vpop.permute.xlu0 %644
      %647 = vset.pattern.permute.xlu0 10
      %648 = vperm.xlu0 %647, %v154
      %v649 = vpop.permute.xlu0 %648
      %vm651 = vcmp.eq.s32.totalorder %v155, 10
      %v652 = vsel %vm651, 1, 0
      %v653 = vlaneseq
      %v654 = vshrl.u32 %v653, 7
      %v655 = vsub.s32 0, %v654
      %v656 = vrot.slane %v652, %v655
      %vm657 = vcmp.eq.s32.totalorder %v656, 1
      %v658 = vsel %vm657, %v621, %v611
      %v659 = vsel %vm657, %v625, %v612
      %v660 = vsel %vm657, %v629, %v613
      %v661 = vsel %vm657, %v633, %v614
      %v662 = vsel %vm657, %v637, %v615
      %v663 = vsel %vm657, %v641, %v616
      %v664 = vsel %vm657, %v645, %v617
      %v665 = vsel %vm657, %v649, %v618
      %666 = vset.pattern.permute.xlu0 11
      %667 = vperm.xlu0 %666, %v147
      %v668 = vpop.permute.xlu0 %667
      %670 = vset.pattern.permute.xlu0 11
      %671 = vperm.xlu0 %670, %v148
      %v672 = vpop.permute.xlu0 %671
      %674 = vset.pattern.permute.xlu0 11
      %675 = vperm.xlu0 %674, %v149
      %v676 = vpop.permute.xlu0 %675
      %678 = vset.pattern.permute.xlu0 11
      %679 = vperm.xlu0 %678, %v150
      %v680 = vpop.permute.xlu0 %679
      %682 = vset.pattern.permute.xlu0 11
      %683 = vperm.xlu0 %682, %v151
      %v684 = vpop.permute.xlu0 %683
      %686 = vset.pattern.permute.xlu0 11
      %687 = vperm.xlu0 %686, %v152
      %v688 = vpop.permute.xlu0 %687
      %690 = vset.pattern.permute.xlu0 11
      %691 = vperm.xlu0 %690, %v153
      %v692 = vpop.permute.xlu0 %691
      %694 = vset.pattern.permute.xlu0 11
      %695 = vperm.xlu0 %694, %v154
      %v696 = vpop.permute.xlu0 %695
      %vm698 = vcmp.eq.s32.totalorder %v155, 11
      %v699 = vsel %vm698, 1, 0
      %v700 = vlaneseq
      %v701 = vshrl.u32 %v700, 7
      %v702 = vsub.s32 0, %v701
      %v703 = vrot.slane %v699, %v702
      %vm704 = vcmp.eq.s32.totalorder %v703, 1
      %v705 = vsel %vm704, %v668, %v658
      %v706 = vsel %vm704, %v672, %v659
      %v707 = vsel %vm704, %v676, %v660
      %v708 = vsel %vm704, %v680, %v661
      %v709 = vsel %vm704, %v684, %v662
      %v710 = vsel %vm704, %v688, %v663
      %v711 = vsel %vm704, %v692, %v664
      %v712 = vsel %vm704, %v696, %v665
      %713 = vset.pattern.permute.xlu0 12
      %714 = vperm.xlu0 %713, %v147
      %v715 = vpop.permute.xlu0 %714
      %717 = vset.pattern.permute.xlu0 12
      %718 = vperm.xlu0 %717, %v148
      %v719 = vpop.permute.xlu0 %718
      %721 = vset.pattern.permute.xlu0 12
      %722 = vperm.xlu0 %721, %v149
      %v723 = vpop.permute.xlu0 %722
      %725 = vset.pattern.permute.xlu0 12
      %726 = vperm.xlu0 %725, %v150
      %v727 = vpop.permute.xlu0 %726
      %729 = vset.pattern.permute.xlu0 12
      %730 = vperm.xlu0 %729, %v151
      %v731 = vpop.permute.xlu0 %730
      %733 = vset.pattern.permute.xlu0 12
      %734 = vperm.xlu0 %733, %v152
      %v735 = vpop.permute.xlu0 %734
      %737 = vset.pattern.permute.xlu0 12
      %738 = vperm.xlu0 %737, %v153
      %v739 = vpop.permute.xlu0 %738
      %741 = vset.pattern.permute.xlu0 12
      %742 = vperm.xlu0 %741, %v154
      %v743 = vpop.permute.xlu0 %742
      %vm745 = vcmp.eq.s32.totalorder %v155, 12
      %v746 = vsel %vm745, 1, 0
      %v747 = vlaneseq
      %v748 = vshrl.u32 %v747, 7
      %v749 = vsub.s32 0, %v748
      %v750 = vrot.slane %v746, %v749
      %vm751 = vcmp.eq.s32.totalorder %v750, 1
      %v752 = vsel %vm751, %v715, %v705
      %v753 = vsel %vm751, %v719, %v706
      %v754 = vsel %vm751, %v723, %v707
      %v755 = vsel %vm751, %v727, %v708
      %v756 = vsel %vm751, %v731, %v709
      %v757 = vsel %vm751, %v735, %v710
      %v758 = vsel %vm751, %v739, %v711
      %v759 = vsel %vm751, %v743, %v712
      %760 = vset.pattern.permute.xlu0 13
      %761 = vperm.xlu0 %760, %v147
      %v762 = vpop.permute.xlu0 %761
      %764 = vset.pattern.permute.xlu0 13
      %765 = vperm.xlu0 %764, %v148
      %v766 = vpop.permute.xlu0 %765
      %768 = vset.pattern.permute.xlu0 13
      %769 = vperm.xlu0 %768, %v149
      %v770 = vpop.permute.xlu0 %769
      %772 = vset.pattern.permute.xlu0 13
      %773 = vperm.xlu0 %772, %v150
      %v774 = vpop.permute.xlu0 %773
      %776 = vset.pattern.permute.xlu0 13
      %777 = vperm.xlu0 %776, %v151
      %v778 = vpop.permute.xlu0 %777
      %780 = vset.pattern.permute.xlu0 13
      %781 = vperm.xlu0 %780, %v152
      %v782 = vpop.permute.xlu0 %781
      %784 = vset.pattern.permute.xlu0 13
      %785 = vperm.xlu0 %784, %v153
      %v786 = vpop.permute.xlu0 %785
      %788 = vset.pattern.permute.xlu0 13
      %789 = vperm.xlu0 %788, %v154
      %v790 = vpop.permute.xlu0 %789
      %vm792 = vcmp.eq.s32.totalorder %v155, 13
      %v793 = vsel %vm792, 1, 0
      %v794 = vlaneseq
      %v795 = vshrl.u32 %v794, 7
      %v796 = vsub.s32 0, %v795
      %v797 = vrot.slane %v793, %v796
      %vm798 = vcmp.eq.s32.totalorder %v797, 1
      %v799 = vsel %vm798, %v762, %v752
      %v800 = vsel %vm798, %v766, %v753
      %v801 = vsel %vm798, %v770, %v754
      %v802 = vsel %vm798, %v774, %v755
      %v803 = vsel %vm798, %v778, %v756
      %v804 = vsel %vm798, %v782, %v757
      %v805 = vsel %vm798, %v786, %v758
      %v806 = vsel %vm798, %v790, %v759
      %807 = vset.pattern.permute.xlu0 14
      %808 = vperm.xlu0 %807, %v147
      %v809 = vpop.permute.xlu0 %808
      %811 = vset.pattern.permute.xlu0 14
      %812 = vperm.xlu0 %811, %v148
      %v813 = vpop.permute.xlu0 %812
      %815 = vset.pattern.permute.xlu0 14
      %816 = vperm.xlu0 %815, %v149
      %v817 = vpop.permute.xlu0 %816
      %819 = vset.pattern.permute.xlu0 14
      %820 = vperm.xlu0 %819, %v150
      %v821 = vpop.permute.xlu0 %820
      %823 = vset.pattern.permute.xlu0 14
      %824 = vperm.xlu0 %823, %v151
      %v825 = vpop.permute.xlu0 %824
      %827 = vset.pattern.permute.xlu0 14
      %828 = vperm.xlu0 %827, %v152
      %v829 = vpop.permute.xlu0 %828
      %831 = vset.pattern.permute.xlu0 14
      %832 = vperm.xlu0 %831, %v153
      %v833 = vpop.permute.xlu0 %832
      %835 = vset.pattern.permute.xlu0 14
      %836 = vperm.xlu0 %835, %v154
      %v837 = vpop.permute.xlu0 %836
      %vm839 = vcmp.eq.s32.totalorder %v155, 14
      %v840 = vsel %vm839, 1, 0
      %v841 = vlaneseq
      %v842 = vshrl.u32 %v841, 7
      %v843 = vsub.s32 0, %v842
      %v844 = vrot.slane %v840, %v843
      %vm845 = vcmp.eq.s32.totalorder %v844, 1
      %v846 = vsel %vm845, %v809, %v799
      %v847 = vsel %vm845, %v813, %v800
      %v848 = vsel %vm845, %v817, %v801
      %v849 = vsel %vm845, %v821, %v802
      %v850 = vsel %vm845, %v825, %v803
      %v851 = vsel %vm845, %v829, %v804
      %v852 = vsel %vm845, %v833, %v805
      %v853 = vsel %vm845, %v837, %v806
      %854 = vset.pattern.permute.xlu0 15
      %855 = vperm.xlu0 %854, %v147
      %v856 = vpop.permute.xlu0 %855
      %858 = vset.pattern.permute.xlu0 15
      %859 = vperm.xlu0 %858, %v148
      %v860 = vpop.permute.xlu0 %859
      %862 = vset.pattern.permute.xlu0 15
      %863 = vperm.xlu0 %862, %v149
      %v864 = vpop.permute.xlu0 %863
      %866 = vset.pattern.permute.xlu0 15
      %867 = vperm.xlu0 %866, %v150
      %v868 = vpop.permute.xlu0 %867
      %870 = vset.pattern.permute.xlu0 15
      %871 = vperm.xlu0 %870, %v151
      %v872 = vpop.permute.xlu0 %871
      %874 = vset.pattern.permute.xlu0 15
      %875 = vperm.xlu0 %874, %v152
      %v876 = vpop.permute.xlu0 %875
      %878 = vset.pattern.permute.xlu0 15
      %879 = vperm.xlu0 %878, %v153
      %v880 = vpop.permute.xlu0 %879
      %882 = vset.pattern.permute.xlu0 15
      %883 = vperm.xlu0 %882, %v154
      %v884 = vpop.permute.xlu0 %883
      %vm886 = vcmp.eq.s32.totalorder %v155, 15
      %v887 = vsel %vm886, 1, 0
      %v888 = vlaneseq
      %v889 = vshrl.u32 %v888, 7
      %v890 = vsub.s32 0, %v889
      %v891 = vrot.slane %v887, %v890
      %vm892 = vcmp.eq.s32.totalorder %v891, 1
      %v893 = vsel %vm892, %v856, %v846
      %v894 = vsel %vm892, %v860, %v847
      %v895 = vsel %vm892, %v864, %v848
      %v896 = vsel %vm892, %v868, %v849
      %v897 = vsel %vm892, %v872, %v850
      %v898 = vsel %vm892, %v876, %v851
      %v899 = vsel %vm892, %v880, %v852
      %v900 = vsel %vm892, %v884, %v853
      %vm901 = vcmask 261120
      %902 = vst.msk [vmem:[%s145] sm:$0xff] %vm901, %v893
      %903 = vst.msk [vmem:[%s145 + $0x8] sm:$0xff] %vm901, %v894
      %904 = vst.msk [vmem:[%s145 + $0x10] sm:$0xff] %vm901, %v895
      %905 = vst.msk [vmem:[%s145 + $0x18] sm:$0xff] %vm901, %v896
      %906 = vst.msk [vmem:[%s145 + $0x20] sm:$0xff] %vm901, %v897
      %907 = vst.msk [vmem:[%s145 + $0x28] sm:$0xff] %vm901, %v898
      %908 = vst.msk [vmem:[%s145 + $0x30] sm:$0xff] %vm901, %v899
      %909 = vst.msk [vmem:[%s145 + $0x38] sm:$0xff] %vm901, %v900
      %918 = vrot.lane.b32.xlu0 %v893, 32
      %v919 = vpop.permute.xlu0 %918
      %920 = vrot.lane.b32.xlu0 %v894, 32
      %v921 = vpop.permute.xlu0 %920
      %922 = vrot.lane.b32.xlu0 %v895, 32
      %v923 = vpop.permute.xlu0 %922
      %924 = vrot.lane.b32.xlu0 %v896, 32
      %v925 = vpop.permute.xlu0 %924
      %926 = vrot.lane.b32.xlu0 %v897, 32
      %v927 = vpop.permute.xlu0 %926
      %928 = vrot.lane.b32.xlu0 %v898, 32
      %v929 = vpop.permute.xlu0 %928
      %930 = vrot.lane.b32.xlu0 %v899, 32
      %v931 = vpop.permute.xlu0 %930
      %932 = vrot.lane.b32.xlu0 %v900, 32
      %v933 = vpop.permute.xlu0 %932
      %vm942 = vcmask 523520
      %943 = vst.msk [vmem:[%s145] sm:$0xff] %vm942, %v919
      %944 = vst.msk [vmem:[%s145 + $0x8] sm:$0xff] %vm942, %v921
      %945 = vst.msk [vmem:[%s145 + $0x10] sm:$0xff] %vm942, %v923
      %946 = vst.msk [vmem:[%s145 + $0x18] sm:$0xff] %vm942, %v925
      %947 = vst.msk [vmem:[%s145 + $0x20] sm:$0xff] %vm942, %v927
      %948 = vst.msk [vmem:[%s145 + $0x28] sm:$0xff] %vm942, %v929
      %949 = vst.msk [vmem:[%s145 + $0x30] sm:$0xff] %vm942, %v931
      %950 = vst.msk [vmem:[%s145 + $0x38] sm:$0xff] %vm942, %v933
      %s951 = smul.u32 8, %s13
      %p952 = scmp.lt.s32.totalorder %s951, 15
      %s953 = scalar_select %p952, %s951, 15
      %s954 = smul.addr %s953, 8
      %s955 = scalar_lea.vmem %s2, %s954
      // Predicated region
      $region29: #{tpu_custom_call.1} parent=27 // pred_check
        %p956 = pneg %p78
      $region30: #{tpu_custom_call.1} parent=27 // pred_check_branch
        %958 = sbr.rel (%p956) target = $region32
      $region31: #{tpu_custom_call.1} parent=27 // pred_region
        %s959 = smul.u32 8, %s13
      $region32: #{tpu_custom_call.1} parent=27 // pred_fallthru
        _
    $region28: #{tpu_custom_call.1} parent=5 // pred_fallthru
      _
    %p960 = scmp.le.s32.totalorder 2, %s8
    // Predicated region
    $region33: #{tpu_custom_call.1} parent=5 // pred_check
      %p961 = pneg %p960
    $region34: #{tpu_custom_call.1} parent=5 // pred_check_branch
      %963 = sbr.rel (%p961) target = $region36
    $region35: #{tpu_custom_call.1} parent=5 // pred_region
      %s964 = ssub.s32 %s8, 2
      // Predicated region
      $region37: #{tpu_custom_call.1} parent=35 // pred_check
        %p965 = pneg %p84
      $region38: #{tpu_custom_call.1} parent=35 // pred_check_branch
        %967 = sbr.rel (%p965) target = $region40
      $region39: #{tpu_custom_call.1} parent=35 // pred_region
        %s968 = smul.u32 8, %s14
        %p969 = scmp.lt.s32.totalorder %s968, 15
        %s970 = scalar_select %p969, %s968, 15
        %s971 = smul.addr %s970, 8
        %s972 = scalar_lea.vmem %s2, %s971
      $region40: #{tpu_custom_call.1} parent=35 // pred_fallthru
        _
    $region36: #{tpu_custom_call.1} parent=5 // pred_fallthru
      _
  $region6: #{tpu_custom_call.1} parent=0 // loop_footer
    %s12 = sadd.s32 1, %s8
  $region7: #{tpu_custom_call.1} parent=0 // loop_footer_branch
    %7 = sbr.rel target = $region3
  $region8: #{tpu_custom_call.1} parent=0 // loop_exit
    _

</llo_original>
